<compile_context>
chip_gen: v7x
topology: tpu7x:2x2x1
jax: 0.10.0
libtpu: 0.0.40
codegen_flags: <defaults>
</compile_context>

<pallas_src>
import functools

import jax
import jax.numpy as jnp
import numpy as np
from jax.experimental import pallas as pl
from jax.experimental.pallas import tpu as pltpu

EPS = 1e-5


def _banded_conv_weights(w_oihw, scale, W):
    """Fold the BN scale into a 3x3 conv weight and expand it into the banded
    (3*slot, W*Cout) matrix that turns the SAME conv on an (H, W*Cin) lane-dense slab
    into a single matmul.  The W-direction zero padding is encoded by the banding."""
    cout, cin, kh, kw = w_oihw.shape
    assert (kh, kw) == (3, 3)
    w_hwio = jnp.transpose(w_oihw, (2, 3, 1, 0)).astype(jnp.float32)          # (3,3,Cin,Cout)
    w_hwio = w_hwio * scale.astype(jnp.float32)[None, None, None, :]          # fold BN scale
    # sel[w_prime, kx, w] = 1  iff  w_prime == w + kx - 1  (the kx shift; out-of-range w_prime
    # simply has no row, which implements the zero padding along W).
    wp = np.arange(W)[:, None, None]
    kx = np.arange(3)[None, :, None]
    w_ = np.arange(W)[None, None, :]
    sel = (wp == w_ + kx - 1).astype(np.float32)                              # (W, 3, W)
    band = jnp.einsum("pxw,yxio->ypiwo", jnp.asarray(sel), w_hwio)            # (3,W,Cin,W,Cout)
    band = band.reshape(3, W * cin, W * cout)
    slot = ((W * cin + 127) // 128) * 128                                     # lane-aligned slot
    wbig = jnp.zeros((3, slot, W * cout), jnp.float32).at[:, : W * cin, :].set(band)
    return wbig.reshape(3 * slot, W * cout), slot


def _basic_block_kernel(x_ref, w1_ref, b1_ref, w2_ref, b2_ref, out_ref,
                        pad_ref, patch_ref, *, H, W, C, slot):
    """Fused conv3x3+BN+ReLU -> conv3x3+BN -> +residual -> ReLU for one batch sample."""
    WC = W * C
    x = x_ref[0]                                          # (H, W*C): conv1 input AND residual

    # H-direction SAME padding: rows 0 and H+1 stay zero.
    pad_ref[...] = jnp.zeros_like(pad_ref)
    if slot != WC:                                        # unused lanes of each ky slot -> 0
        patch_ref[...] = jnp.zeros_like(patch_ref)

    def conv_bn(inp, w_ref, b_ref):
        pad_ref[1:H + 1, :] = inp                         # lane-aligned interior write
        for ky in range(3):                               # three row-shifted slabs (aligned)
            patch_ref[:, ky * slot: ky * slot + WC] = pad_ref[ky:ky + H, :]
        acc = jnp.dot(patch_ref[...], w_ref[...],         # one fat MXU contraction (K = 3*slot)
                      preferred_element_type=jnp.float32)
        return acc + b_ref[...]                           # folded BN bias (per-lane row)

    y1 = jnp.maximum(conv_bn(x, w1_ref, b1_ref), 0.0)     # conv1+bn1+relu, stays in VMEM
    y2 = conv_bn(y1, w2_ref, b2_ref) + x                  # conv2+bn2 + residual
    out_ref[0] = jnp.maximum(y2, 0.0).astype(out_ref.dtype)


def basic_block_flow(x_nchw, params):
    """Forward pass of BasicBlockFlow (stride=1, downsample=None) as one Pallas kernel."""
    N, C, H, W = x_nchw.shape
    planes = params["conv1_w"].shape[0]
    assert planes == C and params["conv1_w"].shape[1] == C, \
        "stride=1 / downsample=None BasicBlockFlow requires inplanes == planes"
    WC = W * C

    # Fold BN (running stats) into per-channel scale (into the conv weights) and bias rows.
    s1 = params["bn1_gamma"] / jnp.sqrt(params["bn1_var"] + EPS)
    b1 = params["bn1_beta"] - params["bn1_mean"] * s1
    s2 = params["bn2_gamma"] / jnp.sqrt(params["bn2_var"] + EPS)
    b2 = params["bn2_beta"] - params["bn2_mean"] * s2

    wbig1, slot = _banded_conv_weights(params["conv1_w"], s1, W)
    wbig2, _ = _banded_conv_weights(params["conv2_w"], s2, W)
    b1_row = jnp.tile(b1.astype(jnp.float32), W).reshape(1, WC)
    b2_row = jnp.tile(b2.astype(jnp.float32), W).reshape(1, WC)

    # NCHW -> lane-dense (N, H, W*C) slab (pure layout change in the wrapper; no padding copies).
    x_slab = jnp.transpose(x_nchw, (0, 2, 3, 1)).astype(jnp.float32).reshape(N, H, WC)

    kernel = functools.partial(_basic_block_kernel, H=H, W=W, C=C, slot=slot)
    out_slab = pl.pallas_call(
        kernel,
        out_shape=jax.ShapeDtypeStruct((N, H, WC), jnp.float32),
        grid=(N,),
        in_specs=[
            pl.BlockSpec((1, H, WC), lambda n: (n, 0, 0)),        # x: conv1 input + residual
            pl.BlockSpec((3 * slot, WC), lambda n: (0, 0)),       # banded conv1 weights (BN folded)
            pl.BlockSpec((1, WC), lambda n: (0, 0)),              # bn1 bias row
            pl.BlockSpec((3 * slot, WC), lambda n: (0, 0)),       # banded conv2 weights (BN folded)
            pl.BlockSpec((1, WC), lambda n: (0, 0)),              # bn2 bias row
        ],
        out_specs=pl.BlockSpec((1, H, WC), lambda n: (n, 0, 0)),  # lane-dense output slab
        scratch_shapes=[
            pltpu.VMEM((H + 2, WC), jnp.float32),                 # row-padded activation (reused)
            pltpu.VMEM((H, 3 * slot), jnp.float32),               # banded matmul LHS
        ],
        compiler_params=pltpu.CompilerParams(dimension_semantics=("parallel",)),
    )(x_slab, wbig1, b1_row, wbig2, b2_row)

    # (N, H, W*C) -> NCHW (metadata-only reshape + one transpose in the wrapper).
    return jnp.transpose(out_slab.reshape(N, H, W, C), (0, 3, 1, 2))


def reference_forward(x_nchw, params):
    """Pure-JAX reference (lax conv) for validation."""
    def conv(x_nhwc, w_hwio):
        return jax.lax.conv_general_dilated(
            x_nhwc, w_hwio, window_strides=(1, 1), padding="SAME",
            dimension_numbers=("NHWC", "HWIO", "NHWC"))

    x = jnp.transpose(x_nchw, (0, 2, 3, 1)).astype(jnp.float32)
    w1 = jnp.transpose(params["conv1_w"], (2, 3, 1, 0)).astype(jnp.float32)
    w2 = jnp.transpose(params["conv2_w"], (2, 3, 1, 0)).astype(jnp.float32)

    def bn(y, g, b, m, v):
        return (y - m) / jnp.sqrt(v + EPS) * g + b

    out = conv(x, w1)
    out = bn(out, params["bn1_gamma"], params["bn1_beta"],
             params["bn1_mean"], params["bn1_var"])
    out = jnp.maximum(out, 0.0)
    out = conv(out, w2)
    out = bn(out, params["bn2_gamma"], params["bn2_beta"],
             params["bn2_mean"], params["bn2_var"])
    out = jnp.maximum(out + x, 0.0)
    return jnp.transpose(out, (0, 3, 1, 2))


def make_params(key, inplanes, planes):
    ks = jax.random.split(key, 8)
    fan1 = inplanes * 9
    fan2 = planes * 9
    return {
        # conv weights in PyTorch OIHW layout
        "conv1_w": jax.random.uniform(ks[0], (planes, inplanes, 3, 3),
                                      jnp.float32, -1.0, 1.0) / np.sqrt(fan1),
        "conv2_w": jax.random.uniform(ks[1], (planes, planes, 3, 3),
                                      jnp.float32, -1.0, 1.0) / np.sqrt(fan2),
        "bn1_gamma": 1.0 + 0.1 * jax.random.normal(ks[2], (planes,), jnp.float32),
        "bn1_beta": 0.1 * jax.random.normal(ks[3], (planes,), jnp.float32),
        "bn1_mean": 0.1 * jax.random.normal(ks[4], (planes,), jnp.float32),
        "bn1_var": jnp.abs(jax.random.normal(ks[5], (planes,), jnp.float32)) + 0.5,
        "bn2_gamma": 1.0 + 0.1 * jax.random.normal(ks[6], (planes,), jnp.float32),
        "bn2_beta": 0.1 * jax.random.normal(ks[7], (planes,), jnp.float32),
        "bn2_mean": jnp.zeros((planes,), jnp.float32),
        "bn2_var": jnp.ones((planes,), jnp.float32),
    }


if __name__ == "__main__":
    # Small shapes consistent with the module: N=2, inplanes=planes=8, H=W=16
    # (stride=1, downsample=None so inplanes must equal planes).  W*C = 128 -> lane-dense.
    key = jax.random.PRNGKey(0)
    k_x, k_p = jax.random.split(key)
    N, C, H, W = 2, 8, 16, 16
    x = jax.random.normal(k_x, (N, C, H, W), jnp.float32)
    params = make_params(k_p, inplanes=C, planes=C)

    out = jax.block_until_ready(basic_block_flow(x, params))
    ref = jax.block_until_ready(reference_forward(x, params))

    assert out.shape == (N, C, H, W)
    np.testing.assert_allclose(np.asarray(out), np.asarray(ref), rtol=1e-4, atol=1e-4)
    print("KERNEL_OK")
</pallas_src>

<mosaic_0001>
module attributes {stable_mosaic.version = 11 : i64} {
  func.func @_basic_block_kernel(%arg0: i32, %arg1: memref<1x16x128xf32, #tpu.memory_space<vmem>>, %arg2: memref<384x128xf32, #tpu.memory_space<vmem>>, %arg3: memref<1x128xf32, #tpu.memory_space<vmem>>, %arg4: memref<384x128xf32, #tpu.memory_space<vmem>>, %arg5: memref<1x128xf32, #tpu.memory_space<vmem>>, %arg6: memref<1x16x128xf32, #tpu.memory_space<vmem>>, %arg7: memref<18x128xf32, #tpu.memory_space<vmem>>, %arg8: memref<16x384xf32, #tpu.memory_space<vmem>>) attributes {dimension_semantics = [#tpu.dimension_semantics<parallel>], iteration_bounds = array<i64: 2>, scalar_prefetch = 0 : i64, scratch_operands = 2 : i64, tpu.core_type = #tpu.core_type<tc>, window_params = [{transform_indices = @transform_0, window_bounds = array<i64: 1, 16, 128>}, {pipeline_mode = #tpu.pipeline_mode<synchronous>, transform_indices = @transform_1, window_bounds = array<i64: 384, 128>}, {pipeline_mode = #tpu.pipeline_mode<synchronous>, transform_indices = @transform_2, window_bounds = array<i64: 1, 128>}, {pipeline_mode = #tpu.pipeline_mode<synchronous>, transform_indices = @transform_3, window_bounds = array<i64: 384, 128>}, {pipeline_mode = #tpu.pipeline_mode<synchronous>, transform_indices = @transform_4, window_bounds = array<i64: 1, 128>}, {transform_indices = @transform_5, window_bounds = array<i64: 1, 16, 128>}]} {
    %c0 = arith.constant 0 : index
    %c0_0 = arith.constant 0 : index
    %c0_1 = arith.constant 0 : index
    %0 = vector.load %arg1[%c0, %c0_0, %c0_1] : memref<1x16x128xf32, #tpu.memory_space<vmem>>, vector<1x16x128xf32>
    %1 = vector.shape_cast %0 : vector<1x16x128xf32> to vector<16x128xf32>
    %cst = arith.constant 0.000000e+00 : f32
    %2 = vector.broadcast %cst : f32 to vector<18x128xf32>
    %c0_2 = arith.constant 0 : index
    %c0_3 = arith.constant 0 : index
    %3 = vector.load %arg7[%c0_2, %c0_3] : memref<18x128xf32, #tpu.memory_space<vmem>>, vector<18x128xf32>
    tpu.vector_store %arg7[%c0_2, %c0_3], %2 {strides = array<i32>} : memref<18x128xf32, #tpu.memory_space<vmem>>, vector<18x128xf32>,
    %c1 = arith.constant 1 : index
    %c0_4 = arith.constant 0 : index
    %4 = vector.load %arg7[%c1, %c0_4] : memref<18x128xf32, #tpu.memory_space<vmem>>, vector<16x128xf32>
    tpu.vector_store %arg7[%c1, %c0_4], %1 {strides = array<i32>} : memref<18x128xf32, #tpu.memory_space<vmem>>, vector<16x128xf32>,
    %c0_5 = arith.constant 0 : index
    %c0_6 = arith.constant 0 : index
    %5 = vector.load %arg7[%c0_5, %c0_6] : memref<18x128xf32, #tpu.memory_space<vmem>>, vector<16x128xf32>
    %c0_7 = arith.constant 0 : index
    %c0_8 = arith.constant 0 : index
    %6 = vector.load %arg8[%c0_7, %c0_8] : memref<16x384xf32, #tpu.memory_space<vmem>>, vector<16x128xf32>
    tpu.vector_store %arg8[%c0_7, %c0_8], %5 {strides = array<i32>} : memref<16x384xf32, #tpu.memory_space<vmem>>, vector<16x128xf32>,
    %c1_9 = arith.constant 1 : index
    %c0_10 = arith.constant 0 : index
    %7 = vector.load %arg7[%c1_9, %c0_10] : memref<18x128xf32, #tpu.memory_space<vmem>>, vector<16x128xf32>
    %c0_11 = arith.constant 0 : index
    %c128 = arith.constant 128 : index
    %8 = vector.load %arg8[%c0_11, %c128] : memref<16x384xf32, #tpu.memory_space<vmem>>, vector<16x128xf32>
    tpu.vector_store %arg8[%c0_11, %c128], %7 {strides = array<i32>} : memref<16x384xf32, #tpu.memory_space<vmem>>, vector<16x128xf32>,
    %c2 = arith.constant 2 : index
    %c0_12 = arith.constant 0 : index
    %9 = vector.load %arg7[%c2, %c0_12] : memref<18x128xf32, #tpu.memory_space<vmem>>, vector<16x128xf32>
    %c0_13 = arith.constant 0 : index
    %c256 = arith.constant 256 : index
    %10 = vector.load %arg8[%c0_13, %c256] : memref<16x384xf32, #tpu.memory_space<vmem>>, vector<16x128xf32>
    tpu.vector_store %arg8[%c0_13, %c256], %9 {strides = array<i32>} : memref<16x384xf32, #tpu.memory_space<vmem>>, vector<16x128xf32>,
    %c0_14 = arith.constant 0 : index
    %c0_15 = arith.constant 0 : index
    %11 = vector.load %arg8[%c0_14, %c0_15] : memref<16x384xf32, #tpu.memory_space<vmem>>, vector<16x384xf32>
    %c0_16 = arith.constant 0 : index
    %c0_17 = arith.constant 0 : index
    %12 = vector.load %arg2[%c0_16, %c0_17] : memref<384x128xf32, #tpu.memory_space<vmem>>, vector<384x128xf32>
    %cst_18 = arith.constant dense<0.000000e+00> : vector<16x128xf32>
    %13 = tpu.matmul %11, %12, %cst_18 {dimension_numbers = #tpu.dot_dimension_numbers<[1], [0], [0], [1], [0, 0, 1, 1], [], []>} : vector<16x384xf32>, vector<384x128xf32>, vector<16x128xf32> -> vector<16x128xf32>
    %c0_19 = arith.constant 0 : index
    %c0_20 = arith.constant 0 : index
    %14 = vector.load %arg3[%c0_19, %c0_20] : memref<1x128xf32, #tpu.memory_space<vmem>>, vector<1x128xf32>
    %15 = vector.broadcast %14 : vector<1x128xf32> to vector<16x128xf32>
    %16 = arith.addf %13, %15 : vector<16x128xf32>
    %cst_21 = arith.constant 0.000000e+00 : f32
    %17 = vector.broadcast %cst_21 : f32 to vector<16x128xf32>
    %18 = arith.maximumf %16, %17 : vector<16x128xf32>
    %c1_22 = arith.constant 1 : index
    %c0_23 = arith.constant 0 : index
    %19 = vector.load %arg7[%c1_22, %c0_23] : memref<18x128xf32, #tpu.memory_space<vmem>>, vector<16x128xf32>
    tpu.vector_store %arg7[%c1_22, %c0_23], %18 {strides = array<i32>} : memref<18x128xf32, #tpu.memory_space<vmem>>, vector<16x128xf32>,
    %c0_24 = arith.constant 0 : index
    %c0_25 = arith.constant 0 : index
    %20 = vector.load %arg7[%c0_24, %c0_25] : memref<18x128xf32, #tpu.memory_space<vmem>>, vector<16x128xf32>
    %c0_26 = arith.constant 0 : index
    %c0_27 = arith.constant 0 : index
    %21 = vector.load %arg8[%c0_26, %c0_27] : memref<16x384xf32, #tpu.memory_space<vmem>>, vector<16x128xf32>
    tpu.vector_store %arg8[%c0_26, %c0_27], %20 {strides = array<i32>} : memref<16x384xf32, #tpu.memory_space<vmem>>, vector<16x128xf32>,
    %c1_28 = arith.constant 1 : index
    %c0_29 = arith.constant 0 : index
    %22 = vector.load %arg7[%c1_28, %c0_29] : memref<18x128xf32, #tpu.memory_space<vmem>>, vector<16x128xf32>
    %c0_30 = arith.constant 0 : index
    %c128_31 = arith.constant 128 : index
    %23 = vector.load %arg8[%c0_30, %c128_31] : memref<16x384xf32, #tpu.memory_space<vmem>>, vector<16x128xf32>
    tpu.vector_store %arg8[%c0_30, %c128_31], %22 {strides = array<i32>} : memref<16x384xf32, #tpu.memory_space<vmem>>, vector<16x128xf32>,
    %c2_32 = arith.constant 2 : index
    %c0_33 = arith.constant 0 : index
    %24 = vector.load %arg7[%c2_32, %c0_33] : memref<18x128xf32, #tpu.memory_space<vmem>>, vector<16x128xf32>
    %c0_34 = arith.constant 0 : index
    %c256_35 = arith.constant 256 : index
    %25 = vector.load %arg8[%c0_34, %c256_35] : memref<16x384xf32, #tpu.memory_space<vmem>>, vector<16x128xf32>
    tpu.vector_store %arg8[%c0_34, %c256_35], %24 {strides = array<i32>} : memref<16x384xf32, #tpu.memory_space<vmem>>, vector<16x128xf32>,
    %c0_36 = arith.constant 0 : index
    %c0_37 = arith.constant 0 : index
    %26 = vector.load %arg8[%c0_36, %c0_37] : memref<16x384xf32, #tpu.memory_space<vmem>>, vector<16x384xf32>
    %c0_38 = arith.constant 0 : index
    %c0_39 = arith.constant 0 : index
    %27 = vector.load %arg4[%c0_38, %c0_39] : memref<384x128xf32, #tpu.memory_space<vmem>>, vector<384x128xf32>
    %cst_40 = arith.constant dense<0.000000e+00> : vector<16x128xf32>
    %28 = tpu.matmul %26, %27, %cst_40 {dimension_numbers = #tpu.dot_dimension_numbers<[1], [0], [0], [1], [0, 0, 1, 1], [], []>} : vector<16x384xf32>, vector<384x128xf32>, vector<16x128xf32> -> vector<16x128xf32>
    %c0_41 = arith.constant 0 : index
    %c0_42 = arith.constant 0 : index
    %29 = vector.load %arg5[%c0_41, %c0_42] : memref<1x128xf32, #tpu.memory_space<vmem>>, vector<1x128xf32>
    %30 = vector.broadcast %29 : vector<1x128xf32> to vector<16x128xf32>
    %31 = arith.addf %28, %30 : vector<16x128xf32>
    %32 = arith.addf %31, %1 : vector<16x128xf32>
    %cst_43 = arith.constant 0.000000e+00 : f32
    %33 = vector.broadcast %cst_43 : f32 to vector<16x128xf32>
    %34 = arith.maximumf %32, %33 : vector<16x128xf32>
    %c0_44 = arith.constant 0 : index
    %c0_45 = arith.constant 0 : index
    %c0_46 = arith.constant 0 : index
    %35 = vector.load %arg6[%c0_44, %c0_45, %c0_46] : memref<1x16x128xf32, #tpu.memory_space<vmem>>, vector<1x16x128xf32>
    %36 = vector.shape_cast %35 : vector<1x16x128xf32> to vector<16x128xf32>
    %37 = vector.shape_cast %34 : vector<16x128xf32> to vector<1x16x128xf32>
    tpu.vector_store %arg6[%c0_44, %c0_45, %c0_46], %37 {strides = array<i32>} : memref<1x16x128xf32, #tpu.memory_space<vmem>>, vector<1x16x128xf32>,
    return
  }
  func.func @transform_0(%arg0: i32) -> (i32, i32, i32) {
    %c0_i32 = arith.constant 0 : i32
    %c0_i32_0 = arith.constant 0 : i32
    %c0_i32_1 = arith.constant 0 : i32
    return %arg0, %c0_i32, %c0_i32_0 : i32, i32, i32
  }
  func.func @transform_1(%arg0: i32) -> (i32, i32) {
    %c0_i32 = arith.constant 0 : i32
    %c0_i32_0 = arith.constant 0 : i32
    %c0_i32_1 = arith.constant 0 : i32
    return %c0_i32, %c0_i32_0 : i32, i32
  }
  func.func @transform_2(%arg0: i32) -> (i32, i32) {
    %c0_i32 = arith.constant 0 : i32
    %c0_i32_0 = arith.constant 0 : i32
    %c0_i32_1 = arith.constant 0 : i32
    return %c0_i32, %c0_i32_0 : i32, i32
  }
  func.func @transform_3(%arg0: i32) -> (i32, i32) {
    %c0_i32 = arith.constant 0 : i32
    %c0_i32_0 = arith.constant 0 : i32
    %c0_i32_1 = arith.constant 0 : i32
    return %c0_i32, %c0_i32_0 : i32, i32
  }
  func.func @transform_4(%arg0: i32) -> (i32, i32) {
    %c0_i32 = arith.constant 0 : i32
    %c0_i32_0 = arith.constant 0 : i32
    %c0_i32_1 = arith.constant 0 : i32
    return %c0_i32, %c0_i32_0 : i32, i32
  }
  func.func @transform_5(%arg0: i32) -> (i32, i32, i32) {
    %c0_i32 = arith.constant 0 : i32
    %c0_i32_0 = arith.constant 0 : i32
    %c0_i32_1 = arith.constant 0 : i32
    return %arg0, %c0_i32, %c0_i32_0 : i32, i32, i32
  }
}

</mosaic_0001>

<llo_original>
// kernel: tpu_custom_call.1
$region0: #{tpu_custom_call.1}
  #allocation0 [shape = 'u32[]', space=smem, size = 0x4, offset = 0x4, fixed_abs, tag = 'smem constant byte address 0x4 - core index']
  #allocation1 [shape = 'u32[144,128]{1,0:T(1,128)}', space=vmem, size = 0x12000, scoped, tag = 'internal scratch']
  #allocation2 [shape = 'f32[18,128]{1,0:T(8,128)}', space=vmem, size = 0x3000, scoped, tag = 'scratch operand']
  #allocation3 [shape = 'f32[16,384]{1,0:T(8,128)}', space=vmem, size = 0x6000, scoped, tag = 'scratch operand']
  %s0 = inlined_call_operand.hbm [shape: f32[2,16,128], index: 0, kind: input, shape index: {}]
  %s1 = inlined_call_operand.hbm [shape: f32[384,128], index: 1, kind: input, shape index: {}]
  %s2 = inlined_call_operand.vmem [shape: f32[1,128], index: 2, kind: input, shape index: {}]
  %s3 = inlined_call_operand.hbm [shape: f32[384,128], index: 3, kind: input, shape index: {}]
  %s4 = inlined_call_operand.vmem [shape: f32[1,128], index: 4, kind: input, shape index: {}]
  %s5 = inlined_call_operand.hbm [shape: f32[2,16,128], index: 5, kind: output, shape index: {}]
  %s6 = sld [smem:[#allocation0]]
  $region65: #{tpu_custom_call.1} parent=0
    _
  %s8 = ssub.s32 1, %s6
  %s9 = scalar_select 0, %s8, %s6
  $region1: #{tpu_custom_call.1} parent=0
    #allocation4 [shape = 'u8[16384]{0}', space=vmem, size = 0x4000, scoped, tag = 'input window, operand 0']
    #allocation5 [shape = 's32[2]{0}', space=sflag, size = 0x8, scoped, tag = 'scoped memory for tpu_custom_call.1']
    #allocation6 [shape = 's32[2]{0}', space=sflag, size = 0x8, scoped, tag = 'scoped memory for tpu_custom_call.1']
    #allocation7 [shape = 'u8[196608]{0}', space=vmem, size = 0x30000, scoped, tag = 'input window, operand 1, single buffered']
    #allocation8 [shape = 's32[1]{0}', space=sflag, size = 0x4, scoped, tag = 'scoped memory for tpu_custom_call.1']
    #allocation9 [shape = 'u8[196608]{0}', space=vmem, size = 0x30000, scoped, tag = 'input window, operand 3, single buffered']
    #allocation10 [shape = 'u8[16384]{0}', space=vmem, size = 0x4000, scoped, tag = 'output window, operand 0']
    %10 = vsyncpa [#allocation5], 0
    %s11 = scalar_lea.sflag [#allocation5], 1
    %12 = vsyncpa %s11, 0
    %13 = vsyncpa [#allocation8], 0
    %14 = vsyncpa [#allocation6], 0
    %s15 = scalar_lea.sflag [#allocation6], 1
    %16 = vsyncpa %s15, 0
    loop: start=0, step=1, limit=4
    $region2: #{tpu_custom_call.1} parent=1 // loop_pre_header
      _
    $region3: #{tpu_custom_call.1} parent=1 // loop_header
      %s18 = sphi 0, %s22
      %p19 = scmp.ge.s32.totalorder %s18, 4
      %s28 = sphi 0, %s30
      %s31 = sphi 0, %s28
      %s32 = sphi 0, %s31
      %s48 = sphi 0, %s32
      %s52 = sphi 0, %s52
      %s54 = sphi 0, %s52
      %s55 = sphi 0, %s54
      %s69 = sphi 0, %s55
      %s73 = sphi 0, %s73
      %s75 = sphi 0, %s73
      %s76 = sphi 0, %s75
      %s90 = sphi 0, %s76
      %s94 = sphi 0, %s94
      %s96 = sphi 0, %s94
      %s97 = sphi 0, %s96
      %s111 = sphi 0, %s97
      %s115 = sphi 0, %s115
      %s117 = sphi 0, %s115
      %s118 = sphi 0, %s117
      %s132 = sphi 0, %s118
      %s138 = sphi 0, %s140
      %s141 = sphi 0, %s138
      %s142 = sphi 0, %s141
      %s158 = sphi 0, %s142
    $region4: #{tpu_custom_call.1} parent=1 // loop_header_branch
      %21 = sbr.rel (%p19) target = $region8
    $region5: #{tpu_custom_call.1} parent=1 // loop_body
      %s23 = ssub.s32 %s18, 1
      %s24 = ssub.s32 %s18, 2
      %s25 = sadd.s32 %s18, 1
      %s26 = ssub.s32 %s18, %s25
      %p27 = scmp.eq.s32.totalorder %s26, 0
      %s29 = sadd.s32 %s28, 1
      %s30 = scalar_select %p27, %s28, %s29
      %p33 = pneg %p27
      %p34 = scmp.eq.s32.totalorder %s18, 1
      %p35 = por %p33, %p34
      %p36 = scmp.ne.s32.totalorder %s28, %s31
      %p37 = scmp.eq.s32.totalorder %s18, 0
      %p38 = por %p36, %p37
      %p39 = scmp.ne.s32.totalorder %s28, %s31
      %p40 = scmp.eq.s32.totalorder %s23, 1
      %p41 = por %p39, %p40
      %p42 = scmp.ne.s32.totalorder %s31, %s32
      %p43 = scmp.eq.s32.totalorder %s23, 0
      %p44 = por %p42, %p43
      %p45 = scmp.ne.s32.totalorder %s31, %s32
      %p46 = scmp.eq.s32.totalorder %s24, 1
      %p47 = por %p45, %p46
      %p49 = scmp.ne.s32.totalorder %s32, %s48
      %p50 = scmp.eq.s32.totalorder %s24, 0
      %p51 = por %p49, %p50
      %s53 = sadd.s32 %s52, 1
      %p56 = scmp.eq.s32.totalorder %s18, 1
      %p57 = scmp.ne.s32.totalorder %s52, %s54
      %p58 = scmp.eq.s32.totalorder %s18, 0
      %p59 = por %p57, %p58
      %p60 = scmp.ne.s32.totalorder %s52, %s54
      %p61 = scmp.eq.s32.totalorder %s23, 1
      %p62 = por %p60, %p61
      %p63 = scmp.ne.s32.totalorder %s54, %s55
      %p64 = scmp.eq.s32.totalorder %s23, 0
      %p65 = por %p63, %p64
      %p66 = scmp.ne.s32.totalorder %s54, %s55
      %p67 = scmp.eq.s32.totalorder %s24, 1
      %p68 = por %p66, %p67
      %p70 = scmp.ne.s32.totalorder %s55, %s69
      %p71 = scmp.eq.s32.totalorder %s24, 0
      %p72 = por %p70, %p71
      %s74 = sadd.s32 %s73, 1
      %p77 = scmp.eq.s32.totalorder %s18, 1
      %p78 = scmp.ne.s32.totalorder %s73, %s75
      %p79 = scmp.eq.s32.totalorder %s18, 0
      %p80 = por %p78, %p79
      %p81 = scmp.ne.s32.totalorder %s73, %s75
      %p82 = scmp.eq.s32.totalorder %s23, 1
      %p83 = por %p81, %p82
      %p84 = scmp.ne.s32.totalorder %s75, %s76
      %p85 = scmp.eq.s32.totalorder %s23, 0
      %p86 = por %p84, %p85
      %p87 = scmp.ne.s32.totalorder %s75, %s76
      %p88 = scmp.eq.s32.totalorder %s24, 1
      %p89 = por %p87, %p88
      %p91 = scmp.ne.s32.totalorder %s76, %s90
      %p92 = scmp.eq.s32.totalorder %s24, 0
      %p93 = por %p91, %p92
      %s95 = sadd.s32 %s94, 1
      %p98 = scmp.eq.s32.totalorder %s18, 1
      %p99 = scmp.ne.s32.totalorder %s94, %s96
      %p100 = scmp.eq.s32.totalorder %s18, 0
      %p101 = por %p99, %p100
      %p102 = scmp.ne.s32.totalorder %s94, %s96
      %p103 = scmp.eq.s32.totalorder %s23, 1
      %p104 = por %p102, %p103
      %p105 = scmp.ne.s32.totalorder %s96, %s97
      %p106 = scmp.eq.s32.totalorder %s23, 0
      %p107 = por %p105, %p106
      %p108 = scmp.ne.s32.totalorder %s96, %s97
      %p109 = scmp.eq.s32.totalorder %s24, 1
      %p110 = por %p108, %p109
      %p112 = scmp.ne.s32.totalorder %s97, %s111
      %p113 = scmp.eq.s32.totalorder %s24, 0
      %p114 = por %p112, %p113
      %s116 = sadd.s32 %s115, 1
      %p119 = scmp.eq.s32.totalorder %s18, 1
      %p120 = scmp.ne.s32.totalorder %s115, %s117
      %p121 = scmp.eq.s32.totalorder %s18, 0
      %p122 = por %p120, %p121
      %p123 = scmp.ne.s32.totalorder %s115, %s117
      %p124 = scmp.eq.s32.totalorder %s23, 1
      %p125 = por %p123, %p124
      %p126 = scmp.ne.s32.totalorder %s117, %s118
      %p127 = scmp.eq.s32.totalorder %s23, 0
      %p128 = por %p126, %p127
      %p129 = scmp.ne.s32.totalorder %s117, %s118
      %p130 = scmp.eq.s32.totalorder %s24, 1
      %p131 = por %p129, %p130
      %p133 = scmp.ne.s32.totalorder %s118, %s132
      %p134 = scmp.eq.s32.totalorder %s24, 0
      %p135 = por %p133, %p134
      %s136 = ssub.s32 %s18, %s25
      %p137 = scmp.eq.s32.totalorder %s136, 0
      %s139 = sadd.s32 %s138, 1
      %s140 = scalar_select %p137, %s138, %s139
      %p143 = pneg %p137
      %p144 = scmp.eq.s32.totalorder %s18, 1
      %p145 = por %p143, %p144
      %p146 = scmp.ne.s32.totalorder %s138, %s141
      %p147 = scmp.eq.s32.totalorder %s18, 0
      %p148 = por %p146, %p147
      %p149 = scmp.ne.s32.totalorder %s138, %s141
      %p150 = scmp.eq.s32.totalorder %s23, 1
      %p151 = por %p149, %p150
      %p152 = scmp.ne.s32.totalorder %s141, %s142
      %p153 = scmp.eq.s32.totalorder %s23, 0
      %p154 = por %p152, %p153
      %p155 = scmp.ne.s32.totalorder %s141, %s142
      %p156 = scmp.eq.s32.totalorder %s24, 1
      %p157 = por %p155, %p156
      %p159 = scmp.ne.s32.totalorder %s142, %s158
      %p160 = scmp.eq.s32.totalorder %s24, 0
      %p161 = por %p159, %p160
      %p162 = scmp.le.s32.totalorder 1, %s18
      %p163 = scmp.lt.s32.totalorder %s18, 3
      %p164 = pnand %p162, %p163
      %p165 = pneg %p164
      // Predicated region
      $region9: #{tpu_custom_call.1} parent=5 // pred_check
        _
      $region10: #{tpu_custom_call.1} parent=5 // pred_check_branch
        %167 = sbr.rel (%p164) target = $region12
      $region11: #{tpu_custom_call.1} parent=5 // pred_region
        %s168 = ssub.s32 %s18, 1
        // Predicated region
        $region13: #{tpu_custom_call.1} parent=11 // pred_check
          %p169 = pneg %p65
        $region14: #{tpu_custom_call.1} parent=11 // pred_check_branch
          %171 = sbr.rel (%p169) target = $region16
        $region15: #{tpu_custom_call.1} parent=11 // pred_region
          %s173 = ssub.s32 6144, 6144
          %174 = vsyncadd [#allocation8], %s173
          %s175 = sshll.u32 [#allocation7], 4
          %s176 = int_to_ptr.vmem [resolvable:$true] %s175
          %181 = dma.hbm_to_vmem [thread:$0]  %s1, 6144, %s176, [#allocation8], 128, 128, 8
        $region16: #{tpu_custom_call.1} parent=11 // pred_fallthru
          _
        // Predicated region
        $region17: #{tpu_custom_call.1} parent=11 // pred_check
          %p182 = pneg %p86
        $region18: #{tpu_custom_call.1} parent=11 // pred_check_branch
          %184 = sbr.rel (%p182) target = $region20
        $region19: #{tpu_custom_call.1} parent=11 // pred_region
          _
        $region20: #{tpu_custom_call.1} parent=11 // pred_fallthru
          _
        // Predicated region
        $region21: #{tpu_custom_call.1} parent=11 // pred_check
          %p185 = pneg %p107
        $region22: #{tpu_custom_call.1} parent=11 // pred_check_branch
          %187 = sbr.rel (%p185) target = $region24
        $region23: #{tpu_custom_call.1} parent=11 // pred_region
          %s189 = ssub.s32 6144, 6144
          %190 = vsyncadd [#allocation8], %s189
          %s191 = sshll.u32 [#allocation9], 4
          %s192 = int_to_ptr.vmem [resolvable:$true] %s191
          %197 = dma.hbm_to_vmem [thread:$0]  %s3, 6144, %s192, [#allocation8], 128, 128, 8
        $region24: #{tpu_custom_call.1} parent=11 // pred_fallthru
          _
        // Predicated region
        $region25: #{tpu_custom_call.1} parent=11 // pred_check
          %p198 = pneg %p128
        $region26: #{tpu_custom_call.1} parent=11 // pred_check_branch
          %200 = sbr.rel (%p198) target = $region28
        $region27: #{tpu_custom_call.1} parent=11 // pred_region
          _
        $region28: #{tpu_custom_call.1} parent=11 // pred_fallthru
          _
      $region12: #{tpu_custom_call.1} parent=5 // pred_fallthru
        _
      %p201 = scmp.lt.s32.totalorder %s18, 2
      // Predicated region
      $region29: #{tpu_custom_call.1} parent=5 // pred_check
        %p202 = pneg %p201
      $region30: #{tpu_custom_call.1} parent=5 // pred_check_branch
        %204 = sbr.rel (%p202) target = $region32
      $region31: #{tpu_custom_call.1} parent=5 // pred_region
        // Predicated region
        $region33: #{tpu_custom_call.1} parent=31 // pred_check
          %p205 = pneg %p38
        $region34: #{tpu_custom_call.1} parent=31 // pred_check_branch
          %207 = sbr.rel (%p205) target = $region36
        $region35: #{tpu_custom_call.1} parent=31 // pred_region
          %s208 = sand.u32 %s28, 1
          %s209 = scalar_lea.sflag [#allocation5], %s208
          %s210 = sand.u32 %s28, 1
          %s211 = smul.addr %s210, 16
          %s212 = scalar_lea.vmem [#allocation4], %s211
          %s214 = ssub.s32 256, 256
          %215 = vsyncadd %s209, %s214
          %s216 = smul.addr %s18, 2
          %s217 = smul.addr %s216, 128
          %s218 = scalar_lea.hbm %s0, %s217
          %s219 = sshll.u32 %s212, 4
          %s220 = int_to_ptr.vmem [resolvable:$true] %s219
          %225 = dma.hbm_to_vmem [thread:$0]  %s218, 256, %s220, %s209, 128, 128, 8
        $region36: #{tpu_custom_call.1} parent=31 // pred_fallthru
          _
      $region32: #{tpu_custom_call.1} parent=5 // pred_fallthru
        _
      %p226 = scmp.le.s32.totalorder 1, %s18
      %p227 = scmp.lt.s32.totalorder %s18, 3
      %p228 = pnand %p226, %p227
      %p229 = pneg %p228
      // Predicated region
      $region37: #{tpu_custom_call.1} parent=5 // pred_check
        _
      $region38: #{tpu_custom_call.1} parent=5 // pred_check_branch
        %231 = sbr.rel (%p228) target = $region40
      $region39: #{tpu_custom_call.1} parent=5 // pred_region
        %s232 = ssub.s32 %s18, 1
        %s233 = sand.u32 %s31, 1
        %s234 = scalar_lea.sflag [#allocation5], %s233
        %s235 = sand.u32 %s31, 1
        %s236 = smul.addr %s235, 16
        %s237 = scalar_lea.vmem [#allocation4], %s236
        // Predicated region
        $region41: #{tpu_custom_call.1} parent=39 // pred_check
          %p238 = pneg %p44
        $region42: #{tpu_custom_call.1} parent=39 // pred_check_branch
          %240 = sbr.rel (%p238) target = $region44
        $region43: #{tpu_custom_call.1} parent=39 // pred_region
          %241 = dma.done %s234, 256
        $region44: #{tpu_custom_call.1} parent=39 // pred_fallthru
          _
        // Predicated region
        $region45: #{tpu_custom_call.1} parent=39 // pred_check
          %p242 = pneg %p65
        $region46: #{tpu_custom_call.1} parent=39 // pred_check_branch
          %244 = sbr.rel (%p242) target = $region48
        $region47: #{tpu_custom_call.1} parent=39 // pred_region
          %245 = dma.done [#allocation8], 6144
        $region48: #{tpu_custom_call.1} parent=39 // pred_fallthru
          _
        // Predicated region
        $region49: #{tpu_custom_call.1} parent=39 // pred_check
          %p246 = pneg %p107
        $region50: #{tpu_custom_call.1} parent=39 // pred_check_branch
          %248 = sbr.rel (%p246) target = $region52
        $region51: #{tpu_custom_call.1} parent=39 // pred_region
          %249 = dma.done [#allocation8], 6144
        $region52: #{tpu_custom_call.1} parent=39 // pred_fallthru
          _
        %s250 = sand.u32 %s31, 1
        %s251 = scalar_lea.sflag [#allocation5], %s250
        %s252 = sand.u32 %s31, 1
        %s253 = smul.addr %s252, 16
        %s254 = scalar_lea.vmem [#allocation4], %s253
        %p255 = pneg %p44
        %p256 = pneg %p41
        %p257 = pneg %p65
        %p258 = pneg %p62
        %p259 = pneg %p86
        %p260 = pneg %p83
        %p261 = pneg %p107
        %p262 = pneg %p104
        %p263 = pneg %p128
        %p264 = pneg %p125
        %p265 = pneg %p154
        %p266 = pneg %p151
        %s267 = sand.u32 %s141, 1
        %s268 = scalar_lea.sflag [#allocation6], %s267
        %s269 = sand.u32 %s141, 1
        %s270 = smul.addr %s269, 16
        %s271 = scalar_lea.vmem [#allocation10], %s270
        %v272 = vld [vmem:[%s237] sm:$0xff]
        %v273 = vld [vmem:[%s237 + $0x8] sm:$0xff]
        %274 = vst [vmem:[#allocation2] sm:$0xff] 0.0
        %275 = vst [vmem:[#allocation2 + $0x8] sm:$0xff] 0.0
        %276 = vst [vmem:[#allocation2 + $0x10] sm:$0x3] 0.0
        %277 = vst [vmem:[#allocation2 + $0x1] sm:$0xff] %v272
        %278 = vst [vmem:[#allocation2 + $0x9] sm:$0xff] %v273
        %v279 = vld [vmem:[#allocation2] sm:$0xff]
        %v280 = vld [vmem:[#allocation2 + $0x8] sm:$0xff]
        %281 = vst [vmem:[#allocation3] sm:$0xff] %v279
        %282 = vst [vmem:[#allocation3 + $0x18] sm:$0xff] %v280
        %v283 = vld [vmem:[#allocation2 + $0x1] sm:$0xff]
        %v284 = vld [vmem:[#allocation2 + $0x9] sm:$0xff]
        %285 = vst [vmem:[#allocation3 + $0x8] sm:$0xff] %v283
        %286 = vst [vmem:[#allocation3 + $0x20] sm:$0xff] %v284
        %v287 = vld [vmem:[#allocation2 + $0x2] sm:$0xff]
        %v288 = vld [vmem:[#allocation2 + $0xa] sm:$0xff]
        %289 = vst [vmem:[#allocation3 + $0x10] sm:$0xff] %v287
        %290 = vst [vmem:[#allocation3 + $0x28] sm:$0xff] %v288
        %v291 = vld [vmem:[#allocation3] sm:$0xff]
        %v292 = vld [vmem:[#allocation3 + $0x8] sm:$0xff]
        %v293 = vld [vmem:[#allocation3 + $0x10] sm:$0xff]
        %v294 = vld [vmem:[#allocation3 + $0x18] sm:$0xff]
        %v295 = vld [vmem:[#allocation3 + $0x20] sm:$0xff]
        %v296 = vld [vmem:[#allocation3 + $0x28] sm:$0xff]
        %v297 = vld [vmem:[#allocation7] sm:$0xff]
        %v298 = vld [vmem:[#allocation7 + $0x8] sm:$0xff]
        %v299 = vld [vmem:[#allocation7 + $0x10] sm:$0xff]
        %v300 = vld [vmem:[#allocation7 + $0x18] sm:$0xff]
        %v301 = vld [vmem:[#allocation7 + $0x20] sm:$0xff]
        %v302 = vld [vmem:[#allocation7 + $0x28] sm:$0xff]
        %v303 = vld [vmem:[#allocation7 + $0x30] sm:$0xff]
        %v304 = vld [vmem:[#allocation7 + $0x38] sm:$0xff]
        %v305 = vld [vmem:[#allocation7 + $0x40] sm:$0xff]
        %v306 = vld [vmem:[#allocation7 + $0x48] sm:$0xff]
        %v307 = vld [vmem:[#allocation7 + $0x50] sm:$0xff]
        %v308 = vld [vmem:[#allocation7 + $0x58] sm:$0xff]
        %v309 = vld [vmem:[#allocation7 + $0x60] sm:$0xff]
        %v310 = vld [vmem:[#allocation7 + $0x68] sm:$0xff]
        %v311 = vld [vmem:[#allocation7 + $0x70] sm:$0xff]
        %v312 = vld [vmem:[#allocation7 + $0x78] sm:$0xff]
        %v313 = vld [vmem:[#allocation7 + $0x80] sm:$0xff]
        %v314 = vld [vmem:[#allocation7 + $0x88] sm:$0xff]
        %v315 = vld [vmem:[#allocation7 + $0x90] sm:$0xff]
        %v316 = vld [vmem:[#allocation7 + $0x98] sm:$0xff]
        %v317 = vld [vmem:[#allocation7 + $0xa0] sm:$0xff]
        %v318 = vld [vmem:[#allocation7 + $0xa8] sm:$0xff]
        %v319 = vld [vmem:[#allocation7 + $0xb0] sm:$0xff]
        %v320 = vld [vmem:[#allocation7 + $0xb8] sm:$0xff]
        %v321 = vld [vmem:[#allocation7 + $0xc0] sm:$0xff]
        %v322 = vld [vmem:[#allocation7 + $0xc8] sm:$0xff]
        %v323 = vld [vmem:[#allocation7 + $0xd0] sm:$0xff]
        %v324 = vld [vmem:[#allocation7 + $0xd8] sm:$0xff]
        %v325 = vld [vmem:[#allocation7 + $0xe0] sm:$0xff]
        %v326 = vld [vmem:[#allocation7 + $0xe8] sm:$0xff]
        %v327 = vld [vmem:[#allocation7 + $0xf0] sm:$0xff]
        %v328 = vld [vmem:[#allocation7 + $0xf8] sm:$0xff]
        %v329 = vld [vmem:[#allocation7 + $0x100] sm:$0xff]
        %v330 = vld [vmem:[#allocation7 + $0x108] sm:$0xff]
        %v331 = vld [vmem:[#allocation7 + $0x110] sm:$0xff]
        %v332 = vld [vmem:[#allocation7 + $0x118] sm:$0xff]
        %v333 = vld [vmem:[#allocation7 + $0x120] sm:$0xff]
        %v334 = vld [vmem:[#allocation7 + $0x128] sm:$0xff]
        %v335 = vld [vmem:[#allocation7 + $0x130] sm:$0xff]
        %v336 = vld [vmem:[#allocation7 + $0x138] sm:$0xff]
        %v337 = vld [vmem:[#allocation7 + $0x140] sm:$0xff]
        %v338 = vld [vmem:[#allocation7 + $0x148] sm:$0xff]
        %v339 = vld [vmem:[#allocation7 + $0x150] sm:$0xff]
        %v340 = vld [vmem:[#allocation7 + $0x158] sm:$0xff]
        %v341 = vld [vmem:[#allocation7 + $0x160] sm:$0xff]
        %v342 = vld [vmem:[#allocation7 + $0x168] sm:$0xff]
        %v343 = vld [vmem:[#allocation7 + $0x170] sm:$0xff]
        %v344 = vld [vmem:[#allocation7 + $0x178] sm:$0xff]
        %v345 = vld [vmem:[%s2] sm:$0x1]
        %v347 = vlaneseq
        %v348 = vshrl.u32 %v347, 7
        %v349 = vsub.s32 0, %v348
        %v350 = vrot.slane %v345, %v349
        %352 = vmatprep.subr.mxu0 0.0
        %353 = vmatpush1.msra.mxu0 %v297
        %354 = vmatprep.subr.mxu0 0.0
        %355 = vmatpush1.msra.mxu0 %v298
        %356 = vmatprep.subr.mxu0 0.0
        %357 = vmatpush1.msra.mxu0 %v299
        %358 = vmatprep.subr.mxu0 0.0
        %359 = vmatpush1.msra.mxu0 %v300
        %360 = vmatprep.subr.mxu0 0.0
        %361 = vmatpush1.msra.mxu0 %v301
        %362 = vmatprep.subr.mxu0 0.0
        %363 = vmatpush1.msra.mxu0 %v302
        %364 = vmatprep.subr.mxu0 0.0
        %365 = vmatpush1.msra.mxu0 %v303
        %366 = vmatprep.subr.mxu0 0.0
        %367 = vmatpush1.msra.mxu0 %v304
        %368 = vmatprep.subr.mxu0 0.0
        %369 = vmatpush1.msra.mxu0 %v305
        %370 = vmatprep.subr.mxu0 0.0
        %371 = vmatpush1.msra.mxu0 %v306
        %372 = vmatprep.subr.mxu0 0.0
        %373 = vmatpush1.msra.mxu0 %v307
        %374 = vmatprep.subr.mxu0 0.0
        %375 = vmatpush1.msra.mxu0 %v308
        %376 = vmatprep.subr.mxu0 0.0
        %377 = vmatpush1.msra.mxu0 %v309
        %378 = vmatprep.subr.mxu0 0.0
        %379 = vmatpush1.msra.mxu0 %v310
        %380 = vmatprep.subr.mxu0 0.0
        %381 = vmatpush1.msra.mxu0 %v311
        %382 = vmatprep.subr.mxu0 0.0
        %383 = vmatpush1.msra.mxu0 %v312
        %384 = vmatprep.subr.mxu0 0.0
        %385 = vmatpush1.msra.mxu0 %v313
        %386 = vmatprep.subr.mxu0 0.0
        %387 = vmatpush1.msra.mxu0 %v314
        %388 = vmatprep.subr.mxu0 0.0
        %389 = vmatpush1.msra.mxu0 %v315
        %390 = vmatprep.subr.mxu0 0.0
        %391 = vmatpush1.msra.mxu0 %v316
        %392 = vmatprep.subr.mxu0 0.0
        %393 = vmatpush1.msra.mxu0 %v317
        %394 = vmatprep.subr.mxu0 0.0
        %395 = vmatpush1.msra.mxu0 %v318
        %396 = vmatprep.subr.mxu0 0.0
        %397 = vmatpush1.msra.mxu0 %v319
        %398 = vmatprep.subr.mxu0 0.0
        %399 = vmatpush1.msra.mxu0 %v320
        %400 = vmatprep.subr.mxu0 0.0
        %401 = vmatpush1.msra.mxu0 %v321
        %402 = vmatprep.subr.mxu0 0.0
        %403 = vmatpush1.msra.mxu0 %v322
        %404 = vmatprep.subr.mxu0 0.0
        %405 = vmatpush1.msra.mxu0 %v323
        %406 = vmatprep.subr.mxu0 0.0
        %407 = vmatpush1.msra.mxu0 %v324
        %408 = vmatprep.subr.mxu0 0.0
        %409 = vmatpush1.msra.mxu0 %v325
        %410 = vmatprep.subr.mxu0 0.0
        %411 = vmatpush1.msra.mxu0 %v326
        %412 = vmatprep.subr.mxu0 0.0
        %413 = vmatpush1.msra.mxu0 %v327
        %414 = vmatprep.subr.mxu0 0.0
        %415 = vmatpush1.msra.mxu0 %v328
        %416 = vmatprep.mubr.f32.mxu0 %v292
        %417 = vmatmul.mubr.f32.gmra.mrb[0].mxu0 %v291
        %v418 = vpop.f32.mrb[0].mxu0
        %v419 = vadd.f32 %v350, %v418
        %v420 = vpop.f32.mrb[0].mxu0
        %421 = vmatprep.mubr.f32.mxu0 %v295
        %422 = vmatmul.mubr.f32.gmra.mrb[0].mxu0 %v294
        %v423 = vpop.f32.mrb[0].mxu0
        %v424 = vadd.f32 %v350, %v423
        %v425 = vpop.f32.mrb[0].mxu0
        %426 = vdwg.mxu0
        %427 = vmatprep.subr.mxu0 0.0
        %428 = vmatpush1.msra.mxu0 %v329
        %429 = vmatprep.subr.mxu0 0.0
        %430 = vmatpush1.msra.mxu0 %v330
        %431 = vmatprep.subr.mxu0 0.0
        %432 = vmatpush1.msra.mxu0 %v331
        %433 = vmatprep.subr.mxu0 0.0
        %434 = vmatpush1.msra.mxu0 %v332
        %435 = vmatprep.subr.mxu0 0.0
        %436 = vmatpush1.msra.mxu0 %v333
        %437 = vmatprep.subr.mxu0 0.0
        %438 = vmatpush1.msra.mxu0 %v334
        %439 = vmatprep.subr.mxu0 0.0
        %440 = vmatpush1.msra.mxu0 %v335
        %441 = vmatprep.subr.mxu0 0.0
        %442 = vmatpush1.msra.mxu0 %v336
        %443 = vmatprep.subr.mxu0 0.0
        %444 = vmatpush1.msra.mxu0 %v337
        %445 = vmatprep.subr.mxu0 0.0
        %446 = vmatpush1.msra.mxu0 %v338
        %447 = vmatprep.subr.mxu0 0.0
        %448 = vmatpush1.msra.mxu0 %v339
        %449 = vmatprep.subr.mxu0 0.0
        %450 = vmatpush1.msra.mxu0 %v340
        %451 = vmatprep.subr.mxu0 0.0
        %452 = vmatpush1.msra.mxu0 %v341
        %453 = vmatprep.subr.mxu0 0.0
        %454 = vmatpush1.msra.mxu0 %v342
        %455 = vmatprep.subr.mxu0 0.0
        %456 = vmatpush1.msra.mxu0 %v343
        %457 = vmatprep.subr.mxu0 0.0
        %458 = vmatpush1.msra.mxu0 %v344
        %459 = vmatprep.subr.mxu0 0.0
        %460 = vmatpush1.msra.mxu0 0.0
        %461 = vmatprep.subr.mxu0 0.0
        %462 = vmatpush1.msra.mxu0 0.0
        %463 = vmatprep.subr.mxu0 0.0
        %464 = vmatpush1.msra.mxu0 0.0
        %465 = vmatprep.subr.mxu0 0.0
        %466 = vmatpush1.msra.mxu0 0.0
        %467 = vmatprep.subr.mxu0 0.0
        %468 = vmatpush1.msra.mxu0 0.0
        %469 = vmatprep.subr.mxu0 0.0
        %470 = vmatpush1.msra.mxu0 0.0
        %471 = vmatprep.subr.mxu0 0.0
        %472 = vmatpush1.msra.mxu0 0.0
        %473 = vmatprep.subr.mxu0 0.0
        %474 = vmatpush1.msra.mxu0 0.0
        %475 = vmatprep.subr.mxu0 0.0
        %476 = vmatpush1.msra.mxu0 0.0
        %477 = vmatprep.subr.mxu0 0.0
        %478 = vmatpush1.msra.mxu0 0.0
        %479 = vmatprep.subr.mxu0 0.0
        %480 = vmatpush1.msra.mxu0 0.0
        %481 = vmatprep.subr.mxu0 0.0
        %482 = vmatpush1.msra.mxu0 0.0
        %483 = vmatprep.subr.mxu0 0.0
        %484 = vmatpush1.msra.mxu0 0.0
        %485 = vmatprep.subr.mxu0 0.0
        %486 = vmatpush1.msra.mxu0 0.0
        %487 = vmatprep.subr.mxu0 0.0
        %488 = vmatpush1.msra.mxu0 0.0
        %489 = vmatprep.subr.mxu0 0.0
        %490 = vmatpush1.msra.mxu0 0.0
        %491 = vmatprep.mubr.f32.mxu0 0.0
        %492 = vmatmul.mubr.f32.gmra.mrb[0].mxu0 %v293
        %v493 = vpop.f32.mrb[0].mxu0
        %v494 = vadd.f32 %v419, %v493
        %v495 = vpop.f32.mrb[0].mxu0
        %496 = vmatprep.mubr.f32.mxu0 0.0
        %497 = vmatmul.mubr.f32.gmra.mrb[0].mxu0 %v296
        %v498 = vpop.f32.mrb[0].mxu0
        %v499 = vadd.f32 %v424, %v498
        %v500 = vpop.f32.mrb[0].mxu0
        %501 = vdwg.mxu0
        %v502 = vmax.f32 %v494, 0.0
        %v503 = vmax.f32 %v499, 0.0
        %504 = vst [vmem:[#allocation2 + $0x1] sm:$0xff] %v502
        %505 = vst [vmem:[#allocation2 + $0x9] sm:$0xff] %v503
        %v506 = vld [vmem:[#allocation2] sm:$0xff]
        %v507 = vld [vmem:[#allocation2 + $0x8] sm:$0xff]
        %508 = vst [vmem:[#allocation3] sm:$0xff] %v506
        %509 = vst [vmem:[#allocation3 + $0x18] sm:$0xff] %v507
        %v510 = vld [vmem:[#allocation2 + $0x1] sm:$0xff]
        %v511 = vld [vmem:[#allocation2 + $0x9] sm:$0xff]
        %512 = vst [vmem:[#allocation3 + $0x8] sm:$0xff] %v510
        %513 = vst [vmem:[#allocation3 + $0x20] sm:$0xff] %v511
        %v514 = vld [vmem:[#allocation2 + $0x2] sm:$0xff]
        %v515 = vld [vmem:[#allocation2 + $0xa] sm:$0xff]
        %516 = vst [vmem:[#allocation3 + $0x10] sm:$0xff] %v514
        %517 = vst [vmem:[#allocation3 + $0x28] sm:$0xff] %v515
        %v518 = vld [vmem:[#allocation3] sm:$0xff]
        %v519 = vld [vmem:[#allocation3 + $0x8] sm:$0xff]
        %v520 = vld [vmem:[#allocation3 + $0x10] sm:$0xff]
        %v521 = vld [vmem:[#allocation3 + $0x18] sm:$0xff]
        %v522 = vld [vmem:[#allocation3 + $0x20] sm:$0xff]
        %v523 = vld [vmem:[#allocation3 + $0x28] sm:$0xff]
        %v524 = vld [vmem:[#allocation9] sm:$0xff]
        %v525 = vld [vmem:[#allocation9 + $0x8] sm:$0xff]
        %v526 = vld [vmem:[#allocation9 + $0x10] sm:$0xff]
        %v527 = vld [vmem:[#allocation9 + $0x18] sm:$0xff]
        %v528 = vld [vmem:[#allocation9 + $0x20] sm:$0xff]
        %v529 = vld [vmem:[#allocation9 + $0x28] sm:$0xff]
        %v530 = vld [vmem:[#allocation9 + $0x30] sm:$0xff]
        %v531 = vld [vmem:[#allocation9 + $0x38] sm:$0xff]
        %v532 = vld [vmem:[#allocation9 + $0x40] sm:$0xff]
        %v533 = vld [vmem:[#allocation9 + $0x48] sm:$0xff]
        %v534 = vld [vmem:[#allocation9 + $0x50] sm:$0xff]
        %v535 = vld [vmem:[#allocation9 + $0x58] sm:$0xff]
        %v536 = vld [vmem:[#allocation9 + $0x60] sm:$0xff]
        %v537 = vld [vmem:[#allocation9 + $0x68] sm:$0xff]
        %v538 = vld [vmem:[#allocation9 + $0x70] sm:$0xff]
        %v539 = vld [vmem:[#allocation9 + $0x78] sm:$0xff]
        %v540 = vld [vmem:[#allocation9 + $0x80] sm:$0xff]
        %v541 = vld [vmem:[#allocation9 + $0x88] sm:$0xff]
        %v542 = vld [vmem:[#allocation9 + $0x90] sm:$0xff]
        %v543 = vld [vmem:[#allocation9 + $0x98] sm:$0xff]
        %v544 = vld [vmem:[#allocation9 + $0xa0] sm:$0xff]
        %v545 = vld [vmem:[#allocation9 + $0xa8] sm:$0xff]
        %v546 = vld [vmem:[#allocation9 + $0xb0] sm:$0xff]
        %v547 = vld [vmem:[#allocation9 + $0xb8] sm:$0xff]
        %v548 = vld [vmem:[#allocation9 + $0xc0] sm:$0xff]
        %v549 = vld [vmem:[#allocation9 + $0xc8] sm:$0xff]
        %v550 = vld [vmem:[#allocation9 + $0xd0] sm:$0xff]
        %v551 = vld [vmem:[#allocation9 + $0xd8] sm:$0xff]
        %v552 = vld [vmem:[#allocation9 + $0xe0] sm:$0xff]
        %v553 = vld [vmem:[#allocation9 + $0xe8] sm:$0xff]
        %v554 = vld [vmem:[#allocation9 + $0xf0] sm:$0xff]
        %v555 = vld [vmem:[#allocation9 + $0xf8] sm:$0xff]
        %v556 = vld [vmem:[#allocation9 + $0x100] sm:$0xff]
        %v557 = vld [vmem:[#allocation9 + $0x108] sm:$0xff]
        %v558 = vld [vmem:[#allocation9 + $0x110] sm:$0xff]
        %v559 = vld [vmem:[#allocation9 + $0x118] sm:$0xff]
        %v560 = vld [vmem:[#allocation9 + $0x120] sm:$0xff]
        %v561 = vld [vmem:[#allocation9 + $0x128] sm:$0xff]
        %v562 = vld [vmem:[#allocation9 + $0x130] sm:$0xff]
        %v563 = vld [vmem:[#allocation9 + $0x138] sm:$0xff]
        %v564 = vld [vmem:[#allocation9 + $0x140] sm:$0xff]
        %v565 = vld [vmem:[#allocation9 + $0x148] sm:$0xff]
        %v566 = vld [vmem:[#allocation9 + $0x150] sm:$0xff]
        %v567 = vld [vmem:[#allocation9 + $0x158] sm:$0xff]
        %v568 = vld [vmem:[#allocation9 + $0x160] sm:$0xff]
        %v569 = vld [vmem:[#allocation9 + $0x168] sm:$0xff]
        %v570 = vld [vmem:[#allocation9 + $0x170] sm:$0xff]
        %v571 = vld [vmem:[#allocation9 + $0x178] sm:$0xff]
        %v572 = vld [vmem:[%s4] sm:$0x1]
        %v574 = vlaneseq
        %v575 = vshrl.u32 %v574, 7
        %v576 = vsub.s32 0, %v575
        %v577 = vrot.slane %v572, %v576
        %579 = vmatprep.subr.mxu0 0.0
        %580 = vmatpush1.msra.mxu0 %v524
        %581 = vmatprep.subr.mxu0 0.0
        %582 = vmatpush1.msra.mxu0 %v525
        %583 = vmatprep.subr.mxu0 0.0
        %584 = vmatpush1.msra.mxu0 %v526
        %585 = vmatprep.subr.mxu0 0.0
        %586 = vmatpush1.msra.mxu0 %v527
        %587 = vmatprep.subr.mxu0 0.0
        %588 = vmatpush1.msra.mxu0 %v528
        %589 = vmatprep.subr.mxu0 0.0
        %590 = vmatpush1.msra.mxu0 %v529
        %591 = vmatprep.subr.mxu0 0.0
        %592 = vmatpush1.msra.mxu0 %v530
        %593 = vmatprep.subr.mxu0 0.0
        %594 = vmatpush1.msra.mxu0 %v531
        %595 = vmatprep.subr.mxu0 0.0
        %596 = vmatpush1.msra.mxu0 %v532
        %597 = vmatprep.subr.mxu0 0.0
        %598 = vmatpush1.msra.mxu0 %v533
        %599 = vmatprep.subr.mxu0 0.0
        %600 = vmatpush1.msra.mxu0 %v534
        %601 = vmatprep.subr.mxu0 0.0
        %602 = vmatpush1.msra.mxu0 %v535
        %603 = vmatprep.subr.mxu0 0.0
        %604 = vmatpush1.msra.mxu0 %v536
        %605 = vmatprep.subr.mxu0 0.0
        %606 = vmatpush1.msra.mxu0 %v537
        %607 = vmatprep.subr.mxu0 0.0
        %608 = vmatpush1.msra.mxu0 %v538
        %609 = vmatprep.subr.mxu0 0.0
        %610 = vmatpush1.msra.mxu0 %v539
        %611 = vmatprep.subr.mxu0 0.0
        %612 = vmatpush1.msra.mxu0 %v540
        %613 = vmatprep.subr.mxu0 0.0
        %614 = vmatpush1.msra.mxu0 %v541
        %615 = vmatprep.subr.mxu0 0.0
        %616 = vmatpush1.msra.mxu0 %v542
        %617 = vmatprep.subr.mxu0 0.0
        %618 = vmatpush1.msra.mxu0 %v543
        %619 = vmatprep.subr.mxu0 0.0
        %620 = vmatpush1.msra.mxu0 %v544
        %621 = vmatprep.subr.mxu0 0.0
        %622 = vmatpush1.msra.mxu0 %v545
        %623 = vmatprep.subr.mxu0 0.0
        %624 = vmatpush1.msra.mxu0 %v546
        %625 = vmatprep.subr.mxu0 0.0
        %626 = vmatpush1.msra.mxu0 %v547
        %627 = vmatprep.subr.mxu0 0.0
        %628 = vmatpush1.msra.mxu0 %v548
        %629 = vmatprep.subr.mxu0 0.0
        %630 = vmatpush1.msra.mxu0 %v549
        %631 = vmatprep.subr.mxu0 0.0
        %632 = vmatpush1.msra.mxu0 %v550
        %633 = vmatprep.subr.mxu0 0.0
        %634 = vmatpush1.msra.mxu0 %v551
        %635 = vmatprep.subr.mxu0 0.0
        %636 = vmatpush1.msra.mxu0 %v552
        %637 = vmatprep.subr.mxu0 0.0
        %638 = vmatpush1.msra.mxu0 %v553
        %639 = vmatprep.subr.mxu0 0.0
        %640 = vmatpush1.msra.mxu0 %v554
        %641 = vmatprep.subr.mxu0 0.0
        %642 = vmatpush1.msra.mxu0 %v555
        %643 = vmatprep.mubr.f32.mxu0 %v519
        %644 = vmatmul.mubr.f32.gmra.mrb[0].mxu0 %v518
        %v645 = vpop.f32.mrb[0].mxu0
        %v646 = vadd.f32 %v577, %v645
        %v647 = vpop.f32.mrb[0].mxu0
        %648 = vmatprep.mubr.f32.mxu0 %v522
        %649 = vmatmul.mubr.f32.gmra.mrb[0].mxu0 %v521
        %v650 = vpop.f32.mrb[0].mxu0
        %v651 = vadd.f32 %v577, %v650
        %v652 = vpop.f32.mrb[0].mxu0
        %653 = vdwg.mxu0
        %654 = vmatprep.subr.mxu0 0.0
        %655 = vmatpush1.msra.mxu0 %v556
        %656 = vmatprep.subr.mxu0 0.0
        %657 = vmatpush1.msra.mxu0 %v557
        %658 = vmatprep.subr.mxu0 0.0
        %659 = vmatpush1.msra.mxu0 %v558
        %660 = vmatprep.subr.mxu0 0.0
        %661 = vmatpush1.msra.mxu0 %v559
        %662 = vmatprep.subr.mxu0 0.0
        %663 = vmatpush1.msra.mxu0 %v560
        %664 = vmatprep.subr.mxu0 0.0
        %665 = vmatpush1.msra.mxu0 %v561
        %666 = vmatprep.subr.mxu0 0.0
        %667 = vmatpush1.msra.mxu0 %v562
        %668 = vmatprep.subr.mxu0 0.0
        %669 = vmatpush1.msra.mxu0 %v563
        %670 = vmatprep.subr.mxu0 0.0
        %671 = vmatpush1.msra.mxu0 %v564
        %672 = vmatprep.subr.mxu0 0.0
        %673 = vmatpush1.msra.mxu0 %v565
        %674 = vmatprep.subr.mxu0 0.0
        %675 = vmatpush1.msra.mxu0 %v566
        %676 = vmatprep.subr.mxu0 0.0
        %677 = vmatpush1.msra.mxu0 %v567
        %678 = vmatprep.subr.mxu0 0.0
        %679 = vmatpush1.msra.mxu0 %v568
        %680 = vmatprep.subr.mxu0 0.0
        %681 = vmatpush1.msra.mxu0 %v569
        %682 = vmatprep.subr.mxu0 0.0
        %683 = vmatpush1.msra.mxu0 %v570
        %684 = vmatprep.subr.mxu0 0.0
        %685 = vmatpush1.msra.mxu0 %v571
        %686 = vmatprep.subr.mxu0 0.0
        %687 = vmatpush1.msra.mxu0 0.0
        %688 = vmatprep.subr.mxu0 0.0
        %689 = vmatpush1.msra.mxu0 0.0
        %690 = vmatprep.subr.mxu0 0.0
        %691 = vmatpush1.msra.mxu0 0.0
        %692 = vmatprep.subr.mxu0 0.0
        %693 = vmatpush1.msra.mxu0 0.0
        %694 = vmatprep.subr.mxu0 0.0
        %695 = vmatpush1.msra.mxu0 0.0
        %696 = vmatprep.subr.mxu0 0.0
        %697 = vmatpush1.msra.mxu0 0.0
        %698 = vmatprep.subr.mxu0 0.0
        %699 = vmatpush1.msra.mxu0 0.0
        %700 = vmatprep.subr.mxu0 0.0
        %701 = vmatpush1.msra.mxu0 0.0
        %702 = vmatprep.subr.mxu0 0.0
        %703 = vmatpush1.msra.mxu0 0.0
        %704 = vmatprep.subr.mxu0 0.0
        %705 = vmatpush1.msra.mxu0 0.0
        %706 = vmatprep.subr.mxu0 0.0
        %707 = vmatpush1.msra.mxu0 0.0
        %708 = vmatprep.subr.mxu0 0.0
        %709 = vmatpush1.msra.mxu0 0.0
        %710 = vmatprep.subr.mxu0 0.0
        %711 = vmatpush1.msra.mxu0 0.0
        %712 = vmatprep.subr.mxu0 0.0
        %713 = vmatpush1.msra.mxu0 0.0
        %714 = vmatprep.subr.mxu0 0.0
        %715 = vmatpush1.msra.mxu0 0.0
        %716 = vmatprep.subr.mxu0 0.0
        %717 = vmatpush1.msra.mxu0 0.0
        %718 = vmatprep.mubr.f32.mxu0 0.0
        %719 = vmatmul.mubr.f32.gmra.mrb[0].mxu0 %v520
        %v720 = vpop.f32.mrb[0].mxu0
        %v721 = vadd.f32 %v646, %v720
        %v722 = vpop.f32.mrb[0].mxu0
        %723 = vmatprep.mubr.f32.mxu0 0.0
        %724 = vmatmul.mubr.f32.gmra.mrb[0].mxu0 %v523
        %v725 = vpop.f32.mrb[0].mxu0
        %v726 = vadd.f32 %v651, %v725
        %v727 = vpop.f32.mrb[0].mxu0
        %728 = vdwg.mxu0
        %v729 = vadd.f32 %v721, %v272
        %v730 = vadd.f32 %v726, %v273
        %v731 = vmax.f32 %v729, 0.0
        %v732 = vmax.f32 %v730, 0.0
        %733 = vst [vmem:[%s271] sm:$0xff] %v731
        %734 = vst [vmem:[%s271 + $0x8] sm:$0xff] %v732
        %s735 = sand.u32 %s141, 1
        %s736 = scalar_lea.sflag [#allocation6], %s735
        %s737 = sand.u32 %s141, 1
        %s738 = smul.addr %s737, 16
        %s739 = scalar_lea.vmem [#allocation10], %s738
        // Predicated region
        $region53: #{tpu_custom_call.1} parent=39 // pred_check
          %p740 = pneg %p151
        $region54: #{tpu_custom_call.1} parent=39 // pred_check_branch
          %742 = sbr.rel (%p740) target = $region56
        $region55: #{tpu_custom_call.1} parent=39 // pred_region
          %s744 = ssub.s32 256, 256
          %745 = vsyncadd %s736, %s744
          %s746 = smul.addr %s23, 2
          %s747 = smul.addr %s746, 128
          %s748 = scalar_lea.hbm %s5, %s747
          %s749 = sshll.u32 %s739, 4
          %s750 = int_to_ptr.vmem [resolvable:$true] %s749
          %755 = dma.vmem_to_hbm [thread:$0]  %s750, 256, %s748, %s736, 128, 128, 8
        $region56: #{tpu_custom_call.1} parent=39 // pred_fallthru
          _
      $region40: #{tpu_custom_call.1} parent=5 // pred_fallthru
        _
      %p756 = scmp.le.s32.totalorder 2, %s18
      // Predicated region
      $region57: #{tpu_custom_call.1} parent=5 // pred_check
        %p757 = pneg %p756
      $region58: #{tpu_custom_call.1} parent=5 // pred_check_branch
        %759 = sbr.rel (%p757) target = $region60
      $region59: #{tpu_custom_call.1} parent=5 // pred_region
        %s760 = ssub.s32 %s18, 2
        // Predicated region
        $region61: #{tpu_custom_call.1} parent=59 // pred_check
          %p761 = pneg %p157
        $region62: #{tpu_custom_call.1} parent=59 // pred_check_branch
          %763 = sbr.rel (%p761) target = $region64
        $region63: #{tpu_custom_call.1} parent=59 // pred_region
          %s764 = sand.u32 %s142, 1
          %s765 = scalar_lea.sflag [#allocation6], %s764
          %s766 = sand.u32 %s142, 1
          %s767 = smul.addr %s766, 16
          %s768 = scalar_lea.vmem [#allocation10], %s767
          %769 = dma.done %s765, 256
        $region64: #{tpu_custom_call.1} parent=59 // pred_fallthru
          _
      $region60: #{tpu_custom_call.1} parent=5 // pred_fallthru
        _
    $region6: #{tpu_custom_call.1} parent=1 // loop_footer
      %s22 = sadd.s32 1, %s18
    $region7: #{tpu_custom_call.1} parent=1 // loop_footer_branch
      %17 = sbr.rel target = $region3
    $region8: #{tpu_custom_call.1} parent=1 // loop_exit
      _
    %770 = vsyncpa [#allocation5], 1
    %s771 = scalar_lea.sflag [#allocation5], 1
    %772 = vsyncpa %s771, 1
    %773 = vsyncpa [#allocation8], 1
    %774 = vsyncpa [#allocation6], 1
    %s775 = scalar_lea.sflag [#allocation6], 1
    %776 = vsyncpa %s775, 1

</llo_original>
